<compile_context>
chip_gen: v5e
topology: v5e:2x2
jax: 0.10.0
libtpu: 0.0.40
codegen_flags: <defaults>
</compile_context>

<pallas_src>
import jax
import jax.numpy as jnp
from jax.experimental import pallas as pl
from jax.experimental.pallas import tpu as pltpu


def _round_up(x, m):
    return (x + m - 1) // m * m


def _vmem_budget():
    # ~75% of physical VMEM: v5e/v6e 128 MiB -> 96 MiB, v7x 64 MiB -> 48 MiB.
    try:
        cap = int(pltpu.get_tpu_info().vmem_capacity_bytes)
        return max(32 * 1024 * 1024, cap * 3 // 4)
    except Exception:
        return 48 * 1024 * 1024


def _pad_cast(a, shape, dtype):
    """Cast and zero-pad only when needed (aligned inputs: zero extra HBM passes)."""
    if a.dtype != dtype:
        a = a.astype(dtype)
    pads = tuple((0, t - s) for s, t in zip(a.shape, shape))
    if any(p for _, p in pads):
        a = jnp.pad(a, pads)
    return a


# --------------------------------------------------------------------------
# Stage 1: support = x @ W  (rows flattened over batch*nodes, K-tiled)
# --------------------------------------------------------------------------
def _support_kernel(x_ref, w_ref, o_ref, acc_ref):
    # x_ref: (TMS, TKS)  w_ref: (TKS, F_out_pad)  o_ref/acc_ref: (TMS, F_out_pad)
    k = pl.program_id(1)

    @pl.when(k == 0)
    def _():
        acc_ref[...] = jnp.zeros_like(acc_ref)

    acc_ref[...] += jnp.dot(x_ref[...], w_ref[...],
                            preferred_element_type=jnp.float32)

    @pl.when(k == pl.num_programs(1) - 1)
    def _():
        o_ref[...] = acc_ref[...].astype(o_ref.dtype)


# --------------------------------------------------------------------------
# Stage 2a (default): out = adj @ support (+ bias), support slab resident,
# single full-K dot per (batch, row-tile) grid point.
# --------------------------------------------------------------------------
def _agg_resident_bias_kernel(adj_ref, s_ref, b_ref, o_ref):
    # adj_ref: (1, TM, N_row)  s_ref: (1, N_row, F_out_pad)  b_ref: (1, F_out_pad)
    acc = jnp.dot(adj_ref[0], s_ref[0], preferred_element_type=jnp.float32)
    o_ref[0] = (acc + b_ref[...]).astype(o_ref.dtype)


def _agg_resident_kernel(adj_ref, s_ref, o_ref):
    o_ref[0] = jnp.dot(adj_ref[0], s_ref[0],
                       preferred_element_type=jnp.float32).astype(o_ref.dtype)


# --------------------------------------------------------------------------
# Stage 2b (fallback for very large graphs): K-tiled with f32 accumulator.
# --------------------------------------------------------------------------
def _agg_ktiled_bias_kernel(adj_ref, s_ref, b_ref, o_ref, acc_ref):
    k = pl.program_id(2)

    @pl.when(k == 0)
    def _():
        acc_ref[...] = jnp.zeros_like(acc_ref)

    acc_ref[...] += jnp.dot(adj_ref[0], s_ref[0],
                            preferred_element_type=jnp.float32)

    @pl.when(k == pl.num_programs(2) - 1)
    def _():
        o_ref[0] = (acc_ref[...] + b_ref[...]).astype(o_ref.dtype)


def _agg_ktiled_kernel(adj_ref, s_ref, o_ref, acc_ref):
    k = pl.program_id(2)

    @pl.when(k == 0)
    def _():
        acc_ref[...] = jnp.zeros_like(acc_ref)

    acc_ref[...] += jnp.dot(adj_ref[0], s_ref[0],
                            preferred_element_type=jnp.float32)

    @pl.when(k == pl.num_programs(2) - 1)
    def _():
        o_ref[0] = acc_ref[...].astype(o_ref.dtype)


# --------------------------------------------------------------------------
# Wrapper
# --------------------------------------------------------------------------
def graph_convolution(x, adj, weight, bias=None, *, compute_dtype=jnp.float32):
    """Pallas forward of GraphConvolution.

    x: (B, N, F_in)  adj: (B, N, N)  weight: (F_in, F_out)
    bias: (1, 1, F_out) or None.  Returns (B, N, F_out) in x.dtype.
    """
    B, N, F_in = x.shape
    assert adj.shape == (B, N, N), "adjacency/input shape mismatch"
    F_in_w, F_out = weight.shape
    assert F_in_w == F_in, "weight/in_features mismatch"

    out_dtype = x.dtype
    cb = jnp.dtype(compute_dtype).itemsize
    ob = jnp.dtype(out_dtype).itemsize
    budget = _vmem_budget()
    has_bias = bias is not None

    # Lane dims need 128 alignment; row (sublane) dims only need q.
    q = 8 if cb >= 4 else 16
    F_in_pad = _round_up(F_in, 128)
    F_out_pad = _round_up(F_out, 128)

    # ---- stage-2 tiling / padding regime ----------------------------------
    N_sub = _round_up(N, q)
    TM = N_sub if N_sub <= 512 else 256
    N_row = _round_up(N, TM)

    # v7x megacore occupancy: expose >= 2 tiles across the parallel axes.
    while B * (N_row // TM) < 2 and TM % (2 * q) == 0:
        TM //= 2

    # Resident-support path VMEM need (double-buffered blocks).
    resident_need = (2 * TM * N_row * cb            # adj row block
                     + 2 * N_row * F_out_pad * cb   # support slab (resident)
                     + 2 * TM * F_out_pad * ob      # output tile
                     + 2 * F_out_pad * 4)           # bias
    use_resident = resident_need <= budget

    TK = None
    if not use_resident:
        # K-tiled fallback: adj column blocks are lane blocks -> 128-aligned
        # contraction dim; support rows padded to match.
        TM = 256
        N_row = _round_up(N, TM)
        TK = 128
        for cand in (2048, 1024, 512, 256, 128):
            if N_row % cand == 0:
                per_step = (2 * TM * cand * cb + 2 * cand * F_out_pad * cb
                            + 2 * TM * F_out_pad * ob + TM * F_out_pad * 4)
                if per_step <= budget:
                    TK = cand
                    break

    # ---- stage 1: support = x @ W ------------------------------------------
    M = B * N_row
    x_p = _pad_cast(x, (B, N_row, F_in_pad), compute_dtype).reshape(M, F_in_pad)
    w_p = _pad_cast(weight, (F_in_pad, F_out_pad), compute_dtype)

    # K tile so the weight block always fits (v7x 64 MiB hazard).
    TKS = 128
    for cand in (2048, 1024, 512, 256, 128):
        if F_in_pad % cand == 0 and 2 * cand * F_out_pad * cb <= budget // 3:
            TKS = cand
            break

    # Row tile: as large as the budget allows (amortize per-step overhead).
    TMS = q
    for cand in (2048, 1024, 512, 256, 128, 64, 32, 16, 8):
        if cand % q or M % cand:
            continue
        need = (2 * cand * TKS * cb + 2 * cand * F_out_pad * ob
                + cand * F_out_pad * 4 + 2 * TKS * F_out_pad * cb)
        if need <= budget:
            TMS = cand
            break

    support_flat = pl.pallas_call(
        _support_kernel,
        out_shape=jax.ShapeDtypeStruct((M, F_out_pad), compute_dtype),
        grid_spec=pltpu.PrefetchScalarGridSpec(
            num_scalar_prefetch=0,
            grid=(M // TMS, F_in_pad // TKS),
            in_specs=[
                pl.BlockSpec((TMS, TKS), lambda i, k: (i, k)),
                pl.BlockSpec((TKS, F_out_pad), lambda i, k: (k, 0)),
            ],
            out_specs=pl.BlockSpec((TMS, F_out_pad), lambda i, k: (i, 0)),
            scratch_shapes=[pltpu.VMEM((TMS, F_out_pad), jnp.float32)],
        ),
        compiler_params=pltpu.CompilerParams(
            dimension_semantics=("parallel", "arbitrary"),
            vmem_limit_bytes=budget,
        ),
        cost_estimate=pl.CostEstimate(
            flops=2 * M * F_in_pad * F_out_pad,
            transcendentals=0,
            bytes_accessed=(M * F_in_pad * cb
                            + (M // TMS) * F_in_pad * F_out_pad * cb
                            + M * F_out_pad * cb),
        ),
    )(x_p, w_p)
    support = support_flat.reshape(B, N_row, F_out_pad)

    # ---- stage 2: out = adj @ support (+ bias) ------------------------------
    adj_p = _pad_cast(adj, (B, N_row, N_row), compute_dtype)
    if has_bias:
        b_p = _pad_cast(jnp.asarray(bias, jnp.float32).reshape(1, F_out),
                        (1, F_out_pad), jnp.float32)

    if use_resident:
        kernel = _agg_resident_bias_kernel if has_bias else _agg_resident_kernel
        in_specs = [
            pl.BlockSpec((1, TM, N_row), lambda b, i: (b, i, 0)),
            # Support slab stays resident across all row tiles of a batch.
            pl.BlockSpec((1, N_row, F_out_pad), lambda b, i: (b, 0, 0)),
        ]
        operands = [adj_p, support]
        if has_bias:
            in_specs.append(pl.BlockSpec((1, F_out_pad), lambda b, i: (0, 0)))
            operands.append(b_p)

        out_p = pl.pallas_call(
            kernel,
            out_shape=jax.ShapeDtypeStruct((B, N_row, F_out_pad), out_dtype),
            grid_spec=pltpu.PrefetchScalarGridSpec(
                num_scalar_prefetch=0,
                grid=(B, N_row // TM),
                in_specs=in_specs,
                out_specs=pl.BlockSpec((1, TM, F_out_pad), lambda b, i: (b, i, 0)),
            ),
            compiler_params=pltpu.CompilerParams(
                dimension_semantics=("parallel", "parallel"),
                vmem_limit_bytes=budget,
            ),
            cost_estimate=pl.CostEstimate(
                flops=2 * B * N_row * N_row * F_out_pad,
                transcendentals=0,
                bytes_accessed=(B * N_row * N_row * cb
                                + B * N_row * F_out_pad * cb
                                + B * N_row * F_out_pad * ob),
            ),
        )(*operands)
    else:
        kernel = _agg_ktiled_bias_kernel if has_bias else _agg_ktiled_kernel
        in_specs = [
            pl.BlockSpec((1, TM, TK), lambda b, i, k: (b, i, k)),
            pl.BlockSpec((1, TK, F_out_pad), lambda b, i, k: (b, k, 0)),
        ]
        operands = [adj_p, support]
        if has_bias:
            in_specs.append(pl.BlockSpec((1, F_out_pad), lambda b, i, k: (0, 0)))
            operands.append(b_p)

        out_p = pl.pallas_call(
            kernel,
            out_shape=jax.ShapeDtypeStruct((B, N_row, F_out_pad), out_dtype),
            grid_spec=pltpu.PrefetchScalarGridSpec(
                num_scalar_prefetch=0,
                grid=(B, N_row // TM, N_row // TK),
                in_specs=in_specs,
                out_specs=pl.BlockSpec((1, TM, F_out_pad),
                                       lambda b, i, k: (b, i, 0)),
                scratch_shapes=[pltpu.VMEM((TM, F_out_pad), jnp.float32)],
            ),
            compiler_params=pltpu.CompilerParams(
                dimension_semantics=("parallel", "parallel", "arbitrary"),
                vmem_limit_bytes=budget,
            ),
            cost_estimate=pl.CostEstimate(
                flops=2 * B * N_row * N_row * F_out_pad,
                transcendentals=0,
                bytes_accessed=(B * N_row * N_row * cb
                                + B * (N_row // TM) * N_row * F_out_pad * cb
                                + B * N_row * F_out_pad * ob),
            ),
        )(*operands)

    return out_p[:, :N, :F_out]


if __name__ == "__main__":
    # Small synthetic shapes: batch=2, nodes=16, in_features=32, out_features=64
    B, N, F_in, F_out = 2, 16, 32, 64

    key = jax.random.PRNGKey(0)
    kx, ka, kw, kb = jax.random.split(key, 4)

    # Parameter init mirroring the PyTorch module:
    # uniform(-stdv, stdv) with stdv = 1/sqrt(out_features)
    stdv = 1.0 / jnp.sqrt(jnp.float32(F_out))
    weight = jax.random.uniform(kw, (F_in, F_out), jnp.float32,
                                minval=-stdv, maxval=stdv)
    bias = jax.random.uniform(kb, (1, 1, F_out), jnp.float32,
                              minval=-stdv, maxval=stdv)

    x = jax.random.normal(kx, (B, N, F_in), jnp.float32)
    # Row-normalized random dense adjacency as example data.
    adj_raw = jax.random.uniform(ka, (B, N, N), jnp.float32)
    adj = adj_raw / jnp.sum(adj_raw, axis=-1, keepdims=True)

    # Plain-JAX reference.
    ref = jnp.matmul(adj, jnp.matmul(x, weight)) + bias

    # f32 compute path: exact parity with the PyTorch module.
    out_f32 = jax.block_until_ready(
        graph_convolution(x, adj, weight, bias, compute_dtype=jnp.float32))
    assert out_f32.shape == (B, N, F_out)
    assert jnp.allclose(out_f32, ref, atol=1e-5, rtol=1e-5)

    # bf16 fast path (f32 accumulation) — looser tolerance.
    out_bf16 = jax.block_until_ready(
        graph_convolution(x, adj, weight, bias, compute_dtype=jnp.bfloat16))
    assert out_bf16.shape == (B, N, F_out)
    assert jnp.allclose(out_bf16, ref, atol=3e-2, rtol=3e-2)

    # bias=False path, like GraphConvolution(..., bias=False).
    out_nb = jax.block_until_ready(graph_convolution(x, adj, weight, None))
    assert jnp.allclose(out_nb, ref - bias, atol=1e-5, rtol=1e-5)

    print("KERNEL_OK")
</pallas_src>

<mosaic_0001>
module attributes {stable_mosaic.version = 11 : i64} {
  func.func @_support_kernel(%arg0: i32, %arg1: i32, %arg2: memref<32x128xf32, #tpu.memory_space<vmem>>, %arg3: memref<128x128xf32, #tpu.memory_space<vmem>>, %arg4: memref<32x128xf32, #tpu.memory_space<vmem>>, %arg5: memref<32x128xf32, #tpu.memory_space<vmem>>) attributes {dimension_semantics = [#tpu.dimension_semantics<parallel>, #tpu.dimension_semantics<arbitrary>], iteration_bounds = array<i64: 1, 1>, scalar_prefetch = 0 : i64, scratch_operands = 1 : i64, tpu.core_type = #tpu.core_type<tc>, window_params = [{transform_indices = @transform_0, window_bounds = array<i64: 32, 128>}, {transform_indices = @transform_1, window_bounds = array<i64: 128, 128>}, {transform_indices = @transform_2, window_bounds = array<i64: 32, 128>}]} {
    %c0_i32 = arith.constant 0 : i32
    %0 = arith.cmpi eq, %arg1, %c0_i32 : i32
    %1 = arith.extui %0 : i1 to i32
    %c0_i32_0 = arith.constant 0 : i32
    %2 = arith.cmpi ne, %1, %c0_i32_0 : i32
    scf.if %2 {
      %cst_10 = arith.constant 0.000000e+00 : f32
      %12 = vector.broadcast %cst_10 : f32 to vector<32x128xf32>
      %c0_11 = arith.constant 0 : index
      %c0_12 = arith.constant 0 : index
      %13 = vector.load %arg5[%c0_11, %c0_12] : memref<32x128xf32, #tpu.memory_space<vmem>>, vector<32x128xf32>
      tpu.vector_store %arg5[%c0_11, %c0_12], %12 {strides = array<i32>} : memref<32x128xf32, #tpu.memory_space<vmem>>, vector<32x128xf32>,
    } else {
    }
    %c0 = arith.constant 0 : index
    %c0_1 = arith.constant 0 : index
    %3 = vector.load %arg5[%c0, %c0_1] : memref<32x128xf32, #tpu.memory_space<vmem>>, vector<32x128xf32>
    %c0_2 = arith.constant 0 : index
    %c0_3 = arith.constant 0 : index
    %4 = vector.load %arg2[%c0_2, %c0_3] : memref<32x128xf32, #tpu.memory_space<vmem>>, vector<32x128xf32>
    %c0_4 = arith.constant 0 : index
    %c0_5 = arith.constant 0 : index
    %5 = vector.load %arg3[%c0_4, %c0_5] : memref<128x128xf32, #tpu.memory_space<vmem>>, vector<128x128xf32>
    %cst = arith.constant dense<0.000000e+00> : vector<32x128xf32>
    %6 = tpu.matmul %4, %5, %cst {dimension_numbers = #tpu.dot_dimension_numbers<[1], [0], [0], [1], [0, 0, 1, 1], [], []>} : vector<32x128xf32>, vector<128x128xf32>, vector<32x128xf32> -> vector<32x128xf32>
    %7 = arith.addf %3, %6 : vector<32x128xf32>
    %c0_6 = arith.constant 0 : index
    %c0_7 = arith.constant 0 : index
    %8 = vector.load %arg5[%c0_6, %c0_7] : memref<32x128xf32, #tpu.memory_space<vmem>>, vector<32x128xf32>
    tpu.vector_store %arg5[%c0_6, %c0_7], %7 {strides = array<i32>} : memref<32x128xf32, #tpu.memory_space<vmem>>, vector<32x128xf32>,
    %c0_i32_8 = arith.constant 0 : i32
    %9 = arith.cmpi eq, %arg1, %c0_i32_8 : i32
    %10 = arith.extui %9 : i1 to i32
    %c0_i32_9 = arith.constant 0 : i32
    %11 = arith.cmpi ne, %10, %c0_i32_9 : i32
    scf.if %11 {
      %c0_10 = arith.constant 0 : index
      %c0_11 = arith.constant 0 : index
      %12 = vector.load %arg5[%c0_10, %c0_11] : memref<32x128xf32, #tpu.memory_space<vmem>>, vector<32x128xf32>
      %c0_12 = arith.constant 0 : index
      %c0_13 = arith.constant 0 : index
      %13 = vector.load %arg4[%c0_12, %c0_13] : memref<32x128xf32, #tpu.memory_space<vmem>>, vector<32x128xf32>
      tpu.vector_store %arg4[%c0_12, %c0_13], %12 {strides = array<i32>} : memref<32x128xf32, #tpu.memory_space<vmem>>, vector<32x128xf32>,
    } else {
    }
    return
  }
  func.func @transform_0(%arg0: i32, %arg1: i32) -> (i32, i32) {
    %c0_i32 = arith.constant 0 : i32
    return %arg0, %arg1 : i32, i32
  }
  func.func @transform_1(%arg0: i32, %arg1: i32) -> (i32, i32) {
    %c0_i32 = arith.constant 0 : i32
    %c0_i32_0 = arith.constant 0 : i32
    return %arg1, %c0_i32 : i32, i32
  }
  func.func @transform_2(%arg0: i32, %arg1: i32) -> (i32, i32) {
    %c0_i32 = arith.constant 0 : i32
    %c0_i32_0 = arith.constant 0 : i32
    return %arg0, %c0_i32 : i32, i32
  }
}

</mosaic_0001>

<llo_original>
// kernel: tpu_custom_call.1
$region0: #{tpu_custom_call.1}
  #allocation0 [shape = 'u32[]', space=smem, size = 0x4, offset = 0x4, fixed_abs, tag = 'smem constant byte address 0x4 - core index']
  #allocation1 [shape = 'u32[72,128]{1,0:T(1,128)}', space=vmem, size = 0x9000, scoped, tag = 'internal scratch']
  #allocation2 [shape = 'f32[32,128]{1,0:T(8,128)}', space=vmem, size = 0x4000, scoped, tag = 'scratch operand']
  %s0 = inlined_call_operand.hbm [shape: f32[32,128], index: 0, kind: input, shape index: {}]
  %s1 = inlined_call_operand.hbm [shape: f32[128,128], index: 1, kind: input, shape index: {}]
  %s2 = inlined_call_operand.hbm [shape: f32[32,128], index: 2, kind: output, shape index: {}]
  %s3 = sld [smem:[#allocation0]]
  $region34: #{tpu_custom_call.1} parent=0
    _
  %s5 = ssub.s32 1, %s3
  %s6 = scalar_select 0, %s5, %s3
  $region1: #{tpu_custom_call.1} parent=0
    #allocation3 [shape = 'u8[16384]{0}', space=vmem, size = 0x4000, scoped, tag = 'input window, operand 0, single buffered']
    #allocation4 [shape = 's32[1]{0}', space=sflag, size = 0x4, scoped, tag = 'scoped memory for tpu_custom_call.1']
    #allocation5 [shape = 's32[1]{0}', space=sflag, size = 0x4, scoped, tag = 'scoped memory for tpu_custom_call.1']
    #allocation6 [shape = 'u8[65536]{0}', space=vmem, size = 0x10000, scoped, tag = 'input window, operand 1, single buffered']
    #allocation7 [shape = 's32[1]{0}', space=sflag, size = 0x4, scoped, tag = 'scoped memory for tpu_custom_call.1']
    #allocation8 [shape = 'u8[16384]{0}', space=vmem, size = 0x4000, scoped, tag = 'output window, operand 0, single buffered']
    %7 = vsyncpa [#allocation4], 0
    %8 = vsyncpa [#allocation7], 0
    %9 = vsyncpa [#allocation5], 0
    // Predicated region
    $region2: #{tpu_custom_call.1} parent=1 // pred_check
      _
    $region3: #{tpu_custom_call.1} parent=1 // pred_check_branch
      %11 = sbr.rel (0) target = $region5
    $region4: #{tpu_custom_call.1} parent=1 // pred_region
      %13 = vsyncadd [#allocation4], 0
      %s14 = sshll.u32 %s0, 4
      %s15 = int_to_ptr.hbm [resolvable:$true] %s14
      %s16 = sshll.u32 [#allocation3], 4
      %s17 = int_to_ptr.vmem [resolvable:$true] %s16
      %22 = dma.hbm_to_vmem [thread:$0]  %s15, 512, %s17, [#allocation4], 128, 128, 8
    $region5: #{tpu_custom_call.1} parent=1 // pred_fallthru
      _
    // Predicated region
    $region6: #{tpu_custom_call.1} parent=1 // pred_check
      _
    $region7: #{tpu_custom_call.1} parent=1 // pred_check_branch
      %24 = sbr.rel (0) target = $region9
    $region8: #{tpu_custom_call.1} parent=1 // pred_region
      %26 = vsyncadd [#allocation7], 0
      %s27 = sshll.u32 %s1, 4
      %s28 = int_to_ptr.hbm [resolvable:$true] %s27
      %s29 = sshll.u32 [#allocation6], 4
      %s30 = int_to_ptr.vmem [resolvable:$true] %s29
      %35 = dma.hbm_to_vmem [thread:$0]  %s28, 2048, %s30, [#allocation7], 128, 128, 8
    $region9: #{tpu_custom_call.1} parent=1 // pred_fallthru
      _
    // Predicated region
    $region10: #{tpu_custom_call.1} parent=1 // pred_check
      _
    $region11: #{tpu_custom_call.1} parent=1 // pred_check_branch
      %37 = sbr.rel (0) target = $region13
    $region12: #{tpu_custom_call.1} parent=1 // pred_region
      %39 = dma.done [#allocation4], 512
    $region13: #{tpu_custom_call.1} parent=1 // pred_fallthru
      _
    // Predicated region
    $region14: #{tpu_custom_call.1} parent=1 // pred_check
      _
    $region15: #{tpu_custom_call.1} parent=1 // pred_check_branch
      %41 = sbr.rel (0) target = $region17
    $region16: #{tpu_custom_call.1} parent=1 // pred_region
      %43 = dma.done [#allocation7], 2048
    $region17: #{tpu_custom_call.1} parent=1 // pred_fallthru
      _
    %p44 = scmp.eq.s32.totalorder 0, 0
    // Predicated region
    $region18: #{tpu_custom_call.1} parent=1 // pred_check
      %p45 = pneg %p44
    $region19: #{tpu_custom_call.1} parent=1 // pred_check_branch
      %47 = sbr.rel (%p45) target = $region21
    $region20: #{tpu_custom_call.1} parent=1 // pred_region
      %48 = vst [vmem:[#allocation2] sm:$0xff] 0.0
      %49 = vst [vmem:[#allocation2 + $0x8] sm:$0xff] 0.0
      %50 = vst [vmem:[#allocation2 + $0x10] sm:$0xff] 0.0
      %51 = vst [vmem:[#allocation2 + $0x18] sm:$0xff] 0.0
    $region21: #{tpu_custom_call.1} parent=1 // pred_fallthru
      _
    %v52 = vld [vmem:[#allocation2] sm:$0xff]
    %v53 = vld [vmem:[#allocation2 + $0x8] sm:$0xff]
    %v54 = vld [vmem:[#allocation2 + $0x10] sm:$0xff]
    %v55 = vld [vmem:[#allocation2 + $0x18] sm:$0xff]
    %v56 = vld [vmem:[#allocation3] sm:$0xff]
    %v57 = vld [vmem:[#allocation3 + $0x8] sm:$0xff]
    %v58 = vld [vmem:[#allocation3 + $0x10] sm:$0xff]
    %v59 = vld [vmem:[#allocation3 + $0x18] sm:$0xff]
    %v60 = vld [vmem:[#allocation6] sm:$0xff]
    %v61 = vld [vmem:[#allocation6 + $0x8] sm:$0xff]
    %v62 = vld [vmem:[#allocation6 + $0x10] sm:$0xff]
    %v63 = vld [vmem:[#allocation6 + $0x18] sm:$0xff]
    %v64 = vld [vmem:[#allocation6 + $0x20] sm:$0xff]
    %v65 = vld [vmem:[#allocation6 + $0x28] sm:$0xff]
    %v66 = vld [vmem:[#allocation6 + $0x30] sm:$0xff]
    %v67 = vld [vmem:[#allocation6 + $0x38] sm:$0xff]
    %v68 = vld [vmem:[#allocation6 + $0x40] sm:$0xff]
    %v69 = vld [vmem:[#allocation6 + $0x48] sm:$0xff]
    %v70 = vld [vmem:[#allocation6 + $0x50] sm:$0xff]
    %v71 = vld [vmem:[#allocation6 + $0x58] sm:$0xff]
    %v72 = vld [vmem:[#allocation6 + $0x60] sm:$0xff]
    %v73 = vld [vmem:[#allocation6 + $0x68] sm:$0xff]
    %v74 = vld [vmem:[#allocation6 + $0x70] sm:$0xff]
    %v75 = vld [vmem:[#allocation6 + $0x78] sm:$0xff]
    %76 = vmatpush.msra.mxu0 %v75
    %77 = vmatpush.msra.mxu0 %v74
    %78 = vmatpush.msra.mxu0 %v73
    %79 = vmatpush.msra.mxu0 %v72
    %80 = vmatpush.msra.mxu0 %v71
    %81 = vmatpush.msra.mxu0 %v70
    %82 = vmatpush.msra.mxu0 %v69
    %83 = vmatpush.msra.mxu0 %v68
    %84 = vmatpush.msra.mxu0 %v67
    %85 = vmatpush.msra.mxu0 %v66
    %86 = vmatpush.msra.mxu0 %v65
    %87 = vmatpush.msra.mxu0 %v64
    %88 = vmatpush.msra.mxu0 %v63
    %89 = vmatpush.msra.mxu0 %v62
    %90 = vmatpush.msra.mxu0 %v61
    %91 = vmatpush.msra.mxu0 %v60
    %92 = vmatmul.f32.gmra.mxu0 %v56
    %v93 = vpop.f32.mrf.mxu0
    %v94 = vadd.f32 0.0, %v93
    %95 = vmatmul.f32.gmra.mxu0 %v57
    %v96 = vpop.f32.mrf.mxu0
    %v97 = vadd.f32 0.0, %v96
    %98 = vmatmul.f32.gmra.mxu0 %v58
    %v99 = vpop.f32.mrf.mxu0
    %v100 = vadd.f32 0.0, %v99
    %101 = vmatmul.f32.gmra.mxu0 %v59
    %v102 = vpop.f32.mrf.mxu0
    %v103 = vadd.f32 0.0, %v102
    %104 = vdwg.mxu0
    %v105 = vadd.f32 %v52, %v94
    %v106 = vadd.f32 %v53, %v97
    %v107 = vadd.f32 %v54, %v100
    %v108 = vadd.f32 %v55, %v103
    %109 = vst [vmem:[#allocation2] sm:$0xff] %v105
    %110 = vst [vmem:[#allocation2 + $0x8] sm:$0xff] %v106
    %111 = vst [vmem:[#allocation2 + $0x10] sm:$0xff] %v107
    %112 = vst [vmem:[#allocation2 + $0x18] sm:$0xff] %v108
    // Predicated region
    $region22: #{tpu_custom_call.1} parent=1 // pred_check
      %p113 = pneg %p44
    $region23: #{tpu_custom_call.1} parent=1 // pred_check_branch
      %115 = sbr.rel (%p113) target = $region25
    $region24: #{tpu_custom_call.1} parent=1 // pred_region
      %v116 = vld [vmem:[#allocation2] sm:$0xff]
      %v117 = vld [vmem:[#allocation2 + $0x8] sm:$0xff]
      %v118 = vld [vmem:[#allocation2 + $0x10] sm:$0xff]
      %v119 = vld [vmem:[#allocation2 + $0x18] sm:$0xff]
      %120 = vst [vmem:[#allocation8] sm:$0xff] %v116
      %121 = vst [vmem:[#allocation8 + $0x8] sm:$0xff] %v117
      %122 = vst [vmem:[#allocation8 + $0x10] sm:$0xff] %v118
      %123 = vst [vmem:[#allocation8 + $0x18] sm:$0xff] %v119
    $region25: #{tpu_custom_call.1} parent=1 // pred_fallthru
      _
    // Predicated region
    $region26: #{tpu_custom_call.1} parent=1 // pred_check
      _
    $region27: #{tpu_custom_call.1} parent=1 // pred_check_branch
      %125 = sbr.rel (0) target = $region29
    $region28: #{tpu_custom_call.1} parent=1 // pred_region
      %127 = vsyncadd [#allocation5], 0
      %s128 = sshll.u32 [#allocation8], 4
      %s129 = int_to_ptr.vmem [resolvable:$true] %s128
      %s130 = sshll.u32 %s2, 4
      %s131 = int_to_ptr.hbm [resolvable:$true] %s130
      %136 = dma.vmem_to_hbm [thread:$0]  %s129, 512, %s131, [#allocation5], 128, 128, 8
    $region29: #{tpu_custom_call.1} parent=1 // pred_fallthru
      _
    // Predicated region
    $region30: #{tpu_custom_call.1} parent=1 // pred_check
      _
    $region31: #{tpu_custom_call.1} parent=1 // pred_check_branch
      %138 = sbr.rel (0) target = $region33
    $region32: #{tpu_custom_call.1} parent=1 // pred_region
      %140 = dma.done [#allocation5], 512
    $region33: #{tpu_custom_call.1} parent=1 // pred_fallthru
      _
    %141 = vsyncpa [#allocation4], 1
    %142 = vsyncpa [#allocation7], 1
    %143 = vsyncpa [#allocation5], 1

</llo_original>
